<compile_context>
chip_gen: v5e
topology: v5e:2x2
jax: 0.10.0
libtpu: 0.0.40
codegen_flags: <defaults>
</compile_context>

<pallas_src>
import math

import jax
import jax.numpy as jnp
from jax.experimental import pallas as pl
from jax.experimental.pallas import tpu as pltpu

# Small shapes consistent with the module (d_model divisible by n_head).
BATCH = 2
SEQ = 8
D_MODEL = 32
N_HEAD = 2
POS_DIM = 1
DIM_FF = 64
EPS = 1e-5
D_K = D_MODEL // N_HEAD
D_ATT = D_K + POS_DIM
N_TOK = BATCH * SEQ

# Row layout of the narrow (width == D_MODEL) parameter slab (slab C).
ROW_W2 = 0
ROW_WVAL = ROW_W2 + DIM_FF               # per-head value rows of Wfc (head-major)
ROW_WPOS = ROW_WVAL + N_HEAD * D_K       # per-head pos rows of Wfc
ROW_BFC = ROW_WPOS + N_HEAD * POS_DIM
ROW_G1 = ROW_BFC + 1
ROW_BE1 = ROW_G1 + 1
ROW_BF2 = ROW_BE1 + 1
ROW_G2 = ROW_BF2 + 1
ROW_BE2 = ROW_G2 + 1
SLAB_C_ROWS = ROW_BE2 + 1


def _encoder_layer_kernel(x_ref, pos_col_ref, pos_row_ref, a_ref, b_ref, c_ref, out_ref):
    x = x_ref[...]                # (N_TOK, D)      -- batch*seq flattened
    pos_col = pos_col_ref[...]    # (N_TOK, 1)
    pos_row = pos_row_ref[...]    # (BATCH, SEQ)    -- pre-scaled by 1/(sqrt(d_att)*S)

    slab_a = a_ref[...]           # (D+1, 3D): [Wq*scale | Wk | Wv] ; [bq*scale | bk | bv]
    slab_b = b_ref[...]           # (D+1, F):  W1 ; bf1
    slab_c = c_ref[...]           # (SLAB_C_ROWS, D)

    # --- fused QKV projection for both batches: one (16,32)x(32,96) MXU pass ---
    wqkv = slab_a[:D_MODEL, :]
    bqkv = slab_a[D_MODEL:D_MODEL + 1, :]
    qkv = jnp.dot(x, wqkv, preferred_element_type=jnp.float32) + bqkv   # (N_TOK, 3D)

    # Per-head value -> output projection, computed once for both batches:
    #   M_val_h = v_h @ Wfc_val_h                                      (N_TOK, D)
    m_val = []
    for h in range(N_HEAD):
        v_h = qkv[:, 2 * D_MODEL + h * D_K: 2 * D_MODEL + (h + 1) * D_K]
        w_val_h = slab_c[ROW_WVAL + h * D_K: ROW_WVAL + (h + 1) * D_K, :]
        m_val.append(jnp.dot(v_h, w_val_h, preferred_element_type=jnp.float32))

    # --- attention: only the SxS score block is per-batch (static loop, B=2) ---
    att_chunks = []
    for b in range(BATCH):
        r0, r1 = b * SEQ, (b + 1) * SEQ
        pos_b = pos_col[r0:r1, :]                        # (S, 1)
        # scaled pos.pos^T as a VPU outer product (no K=1 MXU pass)
        pos_outer = pos_b * pos_row[b:b + 1, :]          # (S,1)*(1,S) -> (S,S)
        acc = None
        for h in range(N_HEAD):
            q_bh = qkv[r0:r1, h * D_K:(h + 1) * D_K]                         # pre-scaled
            k_bh = qkv[r0:r1, D_MODEL + h * D_K: D_MODEL + (h + 1) * D_K]
            scores = jax.lax.dot_general(
                q_bh, k_bh, (((1,), (1,)), ((), ())),
                preferred_element_type=jnp.float32) + pos_outer              # (S, S)
            # fold the per-head [pos, v] concat + Wfc projection:
            #   p_attn @ [pos, v_h] @ Wfc_h = scores @ (pos*w_pos_h + v_h @ w_val_h)
            w_pos_h = slab_c[ROW_WPOS + h * POS_DIM: ROW_WPOS + (h + 1) * POS_DIM, :]
            m_bh = pos_b * w_pos_h + m_val[h][r0:r1, :]                      # VPU outer product
            contrib = jnp.dot(scores, m_bh, preferred_element_type=jnp.float32)
            acc = contrib if acc is None else acc + contrib
        att_chunks.append(acc)

    bfc = slab_c[ROW_BFC:ROW_BFC + 1, :]
    att = jnp.concatenate(att_chunks, axis=0) + bfc      # (N_TOK, D), tile-aligned concat

    # residual (dropout1 identity in eval) + LayerNorm1
    g1 = slab_c[ROW_G1:ROW_G1 + 1, :]
    be1 = slab_c[ROW_BE1:ROW_BE1 + 1, :]
    x1 = x + att
    mu1 = jnp.mean(x1, axis=-1, keepdims=True)
    var1 = jnp.mean((x1 - mu1) ** 2, axis=-1, keepdims=True)
    xn1 = (x1 - mu1) * jax.lax.rsqrt(var1 + EPS) * g1 + be1

    # FeedForward: lr2(relu(lr1(x)))  (ffn dropout identity in eval)
    w1 = slab_b[:D_MODEL, :]
    bf1 = slab_b[D_MODEL:D_MODEL + 1, :]
    w2 = slab_c[ROW_W2:ROW_W2 + DIM_FF, :]
    bf2 = slab_c[ROW_BF2:ROW_BF2 + 1, :]
    hdn = jnp.maximum(jnp.dot(xn1, w1, preferred_element_type=jnp.float32) + bf1, 0.0)
    ffo = jnp.dot(hdn, w2, preferred_element_type=jnp.float32) + bf2

    # residual + LayerNorm2
    g2 = slab_c[ROW_G2:ROW_G2 + 1, :]
    be2 = slab_c[ROW_BE2:ROW_BE2 + 1, :]
    x2 = xn1 + ffo
    mu2 = jnp.mean(x2, axis=-1, keepdims=True)
    var2 = jnp.mean((x2 - mu2) ** 2, axis=-1, keepdims=True)
    out_ref[...] = (x2 - mu2) * jax.lax.rsqrt(var2 + EPS) * g2 + be2


def simple_transformer_encoder_layer(x, pos, params):
    B, S, D = x.shape
    assert (B, S, D) == (BATCH, SEQ, D_MODEL) and pos.shape == (B, S, POS_DIM)
    # 1/sqrt(d_att) from scaled dot product, 1/seq_len from the 'fourier' attention type.
    scale = 1.0 / (math.sqrt(D_ATT) * S)

    x_flat = x.reshape(B * S, D)
    pos_col = pos.reshape(B * S, POS_DIM)
    pos_row = pos.reshape(B, S) * scale            # POS_DIM == 1

    # Slab A: fused QKV weight/bias; attention scale pre-folded into the Q columns.
    wqkv = jnp.concatenate([params["Wq"] * scale, params["Wk"], params["Wv"]], axis=1)
    bqkv = jnp.concatenate([params["bq"] * scale, params["bk"], params["bv"]], axis=1)
    slab_a = jnp.concatenate([wqkv, bqkv], axis=0)                    # (D+1, 3D)

    # Slab B: first FFN layer.
    slab_b = jnp.concatenate([params["W1"], params["bf1"]], axis=0)   # (D+1, F)

    # Slab C: everything with last dim == D_MODEL, head-major Wfc split done wrapper-side.
    wfc_h = params["Wfc"].reshape(N_HEAD, D_ATT, D)
    w_pos = wfc_h[:, :POS_DIM, :].reshape(N_HEAD * POS_DIM, D)
    w_val = wfc_h[:, POS_DIM:, :].reshape(N_HEAD * D_K, D)
    slab_c = jnp.concatenate([
        params["W2"], w_val, w_pos, params["bfc"],
        params["g1"], params["be1"], params["bf2"],
        params["g2"], params["be2"],
    ], axis=0)                                                        # (SLAB_C_ROWS, D)
    assert slab_c.shape == (SLAB_C_ROWS, D)

    vmem_specs = [pl.BlockSpec(memory_space=pltpu.MemorySpace.VMEM) for _ in range(6)]
    out_flat = pl.pallas_call(
        _encoder_layer_kernel,
        out_shape=jax.ShapeDtypeStruct((B * S, D), jnp.float32),
        in_specs=vmem_specs,
        out_specs=pl.BlockSpec(memory_space=pltpu.MemorySpace.VMEM),
    )(x_flat, pos_col, pos_row, slab_a, slab_b, slab_c)
    return out_flat.reshape(B, S, D)


def _layer_norm_ref(x, g, b):
    mu = jnp.mean(x, axis=-1, keepdims=True)
    var = jnp.mean((x - mu) ** 2, axis=-1, keepdims=True)
    return (x - mu) / jnp.sqrt(var + EPS) * g + b


def reference_forward(x, pos, p):
    """Pure-JAX mirror of the PyTorch forward (eval mode)."""
    B, S, D = x.shape
    hp = jax.lax.Precision.HIGHEST
    q = jnp.dot(x, p["Wq"], precision=hp) + p["bq"]
    k = jnp.dot(x, p["Wk"], precision=hp) + p["bk"]
    v = jnp.dot(x, p["Wv"], precision=hp) + p["bv"]

    def split_heads(t):
        return t.reshape(B, S, N_HEAD, D_K).transpose(0, 2, 1, 3)  # (B,H,S,dk)

    q, k, v = map(split_heads, (q, k, v))
    pos_r = jnp.broadcast_to(pos[:, None, :, :], (B, N_HEAD, S, POS_DIM))
    q = jnp.concatenate([pos_r, q], axis=-1)
    k = jnp.concatenate([pos_r, k], axis=-1)
    v = jnp.concatenate([pos_r, v], axis=-1)
    scores = jnp.einsum("bhqd,bhkd->bhqk", q, k, precision=hp) / math.sqrt(D_ATT)
    p_attn = scores / S  # 'fourier' attention
    o = jnp.einsum("bhqk,bhkd->bhqd", p_attn, v, precision=hp)
    o = o.transpose(0, 2, 1, 3).reshape(B, S, N_HEAD * D_ATT)
    att = jnp.dot(o, p["Wfc"], precision=hp) + p["bfc"]

    x1 = _layer_norm_ref(x + att, p["g1"], p["be1"])
    h = jnp.maximum(jnp.dot(x1, p["W1"], precision=hp) + p["bf1"], 0.0)
    ff = jnp.dot(h, p["W2"], precision=hp) + p["bf2"]
    return _layer_norm_ref(x1 + ff, p["g2"], p["be2"])


def init_params(key):
    """Deterministic synthetic init (weights stored as (in, out) so y = x @ W + b)."""
    ks = jax.random.split(key, 10)

    def rnd(k, shape, scale=0.05):
        return (scale * jax.random.normal(k, shape)).astype(jnp.float32)

    eye = 0.01 * jnp.eye(D_MODEL, dtype=jnp.float32)  # mimic diagonal_weight init of QKV
    return {
        "Wq": rnd(ks[0], (D_MODEL, D_MODEL), 0.01) + eye,
        "bq": jnp.zeros((1, D_MODEL), jnp.float32),
        "Wk": rnd(ks[1], (D_MODEL, D_MODEL), 0.01) + eye,
        "bk": jnp.zeros((1, D_MODEL), jnp.float32),
        "Wv": rnd(ks[2], (D_MODEL, D_MODEL), 0.01) + eye,
        "bv": jnp.zeros((1, D_MODEL), jnp.float32),
        "Wfc": rnd(ks[3], (N_HEAD * D_ATT, D_MODEL)),
        "bfc": rnd(ks[4], (1, D_MODEL)),
        "g1": jnp.ones((1, D_MODEL), jnp.float32),
        "be1": jnp.zeros((1, D_MODEL), jnp.float32),
        "W1": rnd(ks[5], (D_MODEL, DIM_FF)),
        "bf1": rnd(ks[6], (1, DIM_FF)),
        "W2": rnd(ks[7], (DIM_FF, D_MODEL)),
        "bf2": rnd(ks[8], (1, D_MODEL)),
        "g2": jnp.ones((1, D_MODEL), jnp.float32),
        "be2": jnp.zeros((1, D_MODEL), jnp.float32),
    }


if __name__ == "__main__":
    key = jax.random.PRNGKey(0)
    kx, kp, kw = jax.random.split(key, 3)
    x = jax.random.normal(kx, (BATCH, SEQ, D_MODEL), jnp.float32)
    # position coords in [0, 1), shape (B, S, pos_dim)
    pos = jax.random.uniform(kp, (BATCH, SEQ, POS_DIM), jnp.float32)
    params = init_params(kw)

    out = simple_transformer_encoder_layer(x, pos, params)
    out = jax.block_until_ready(out)

    ref = jax.block_until_ready(reference_forward(x, pos, params))
    assert out.shape == (BATCH, SEQ, D_MODEL)
    assert jnp.allclose(out, ref, atol=1e-3, rtol=1e-3), (
        f"max abs err = {jnp.max(jnp.abs(out - ref))}"
    )
    print("KERNEL_OK")
</pallas_src>

<mosaic_0001>
module attributes {stable_mosaic.version = 11 : i64} {
  func.func @_encoder_layer_kernel(%arg0: memref<16x32xf32, #tpu.memory_space<vmem>>, %arg1: memref<16x1xf32, #tpu.memory_space<vmem>>, %arg2: memref<2x8xf32, #tpu.memory_space<vmem>>, %arg3: memref<33x96xf32, #tpu.memory_space<vmem>>, %arg4: memref<33x64xf32, #tpu.memory_space<vmem>>, %arg5: memref<104x32xf32, #tpu.memory_space<vmem>>, %arg6: memref<16x32xf32, #tpu.memory_space<vmem>>) attributes {dimension_semantics = [], scalar_prefetch = 0 : i64, scratch_operands = 0 : i64, tpu.core_type = #tpu.core_type<tc>} {
    %c0 = arith.constant 0 : index
    %c0_0 = arith.constant 0 : index
    %0 = vector.load %arg0[%c0, %c0_0] : memref<16x32xf32, #tpu.memory_space<vmem>>, vector<16x32xf32>
    %c0_1 = arith.constant 0 : index
    %c0_2 = arith.constant 0 : index
    %1 = vector.load %arg1[%c0_1, %c0_2] : memref<16x1xf32, #tpu.memory_space<vmem>>, vector<16x1xf32>
    %c0_3 = arith.constant 0 : index
    %c0_4 = arith.constant 0 : index
    %2 = vector.load %arg2[%c0_3, %c0_4] : memref<2x8xf32, #tpu.memory_space<vmem>>, vector<2x8xf32>
    %c0_5 = arith.constant 0 : index
    %c0_6 = arith.constant 0 : index
    %3 = vector.load %arg3[%c0_5, %c0_6] : memref<33x96xf32, #tpu.memory_space<vmem>>, vector<33x96xf32>
    %c0_7 = arith.constant 0 : index
    %c0_8 = arith.constant 0 : index
    %4 = vector.load %arg4[%c0_7, %c0_8] : memref<33x64xf32, #tpu.memory_space<vmem>>, vector<33x64xf32>
    %c0_9 = arith.constant 0 : index
    %c0_10 = arith.constant 0 : index
    %5 = vector.load %arg5[%c0_9, %c0_10] : memref<104x32xf32, #tpu.memory_space<vmem>>, vector<104x32xf32>
    %6 = vector.extract_strided_slice %3 {offsets = [0, 0], sizes = [32, 96], strides = [1, 1]} : vector<33x96xf32> to vector<32x96xf32>
    %7 = vector.extract_strided_slice %3 {offsets = [32, 0], sizes = [1, 96], strides = [1, 1]} : vector<33x96xf32> to vector<1x96xf32>
    %cst = arith.constant dense<0.000000e+00> : vector<16x96xf32>
    %8 = tpu.matmul %0, %6, %cst {dimension_numbers = #tpu.dot_dimension_numbers<[1], [0], [0], [1], [0, 0, 1, 1], [], []>} : vector<16x32xf32>, vector<32x96xf32>, vector<16x96xf32> -> vector<16x96xf32>
    %9 = vector.broadcast %7 : vector<1x96xf32> to vector<16x96xf32>
    %10 = arith.addf %8, %9 : vector<16x96xf32>
    %11 = vector.extract_strided_slice %10 {offsets = [0, 64], sizes = [16, 16], strides = [1, 1]} : vector<16x96xf32> to vector<16x16xf32>
    %12 = vector.extract_strided_slice %5 {offsets = [64, 0], sizes = [16, 32], strides = [1, 1]} : vector<104x32xf32> to vector<16x32xf32>
    %cst_11 = arith.constant dense<0.000000e+00> : vector<16x32xf32>
    %13 = tpu.matmul %11, %12, %cst_11 {dimension_numbers = #tpu.dot_dimension_numbers<[1], [0], [0], [1], [0, 0, 1, 1], [], []>} : vector<16x16xf32>, vector<16x32xf32>, vector<16x32xf32> -> vector<16x32xf32>
    %14 = vector.extract_strided_slice %10 {offsets = [0, 80], sizes = [16, 16], strides = [1, 1]} : vector<16x96xf32> to vector<16x16xf32>
    %15 = vector.extract_strided_slice %5 {offsets = [80, 0], sizes = [16, 32], strides = [1, 1]} : vector<104x32xf32> to vector<16x32xf32>
    %cst_12 = arith.constant dense<0.000000e+00> : vector<16x32xf32>
    %16 = tpu.matmul %14, %15, %cst_12 {dimension_numbers = #tpu.dot_dimension_numbers<[1], [0], [0], [1], [0, 0, 1, 1], [], []>} : vector<16x16xf32>, vector<16x32xf32>, vector<16x32xf32> -> vector<16x32xf32>
    %17 = vector.extract_strided_slice %1 {offsets = [0, 0], sizes = [8, 1], strides = [1, 1]} : vector<16x1xf32> to vector<8x1xf32>
    %18 = vector.extract_strided_slice %2 {offsets = [0, 0], sizes = [1, 8], strides = [1, 1]} : vector<2x8xf32> to vector<1x8xf32>
    %19 = vector.broadcast %17 : vector<8x1xf32> to vector<8x8xf32>
    %20 = vector.broadcast %18 : vector<1x8xf32> to vector<8x8xf32>
    %21 = arith.mulf %19, %20 : vector<8x8xf32>
    %22 = vector.extract_strided_slice %10 {offsets = [0, 0], sizes = [8, 16], strides = [1, 1]} : vector<16x96xf32> to vector<8x16xf32>
    %23 = vector.extract_strided_slice %10 {offsets = [0, 32], sizes = [8, 16], strides = [1, 1]} : vector<16x96xf32> to vector<8x16xf32>
    %cst_13 = arith.constant dense<0.000000e+00> : vector<8x8xf32>
    %24 = tpu.matmul %22, %23, %cst_13 {dimension_numbers = #tpu.dot_dimension_numbers<[1], [1], [0], [0], [0, 0, 1, 0], [], []>} : vector<8x16xf32>, vector<8x16xf32>, vector<8x8xf32> -> vector<8x8xf32>
    %25 = arith.addf %24, %21 : vector<8x8xf32>
    %26 = vector.extract_strided_slice %5 {offsets = [96, 0], sizes = [1, 32], strides = [1, 1]} : vector<104x32xf32> to vector<1x32xf32>
    %27 = vector.broadcast %17 : vector<8x1xf32> to vector<8x32xf32>
    %28 = vector.broadcast %26 : vector<1x32xf32> to vector<8x32xf32>
    %29 = arith.mulf %27, %28 : vector<8x32xf32>
    %30 = vector.extract_strided_slice %13 {offsets = [0, 0], sizes = [8, 32], strides = [1, 1]} : vector<16x32xf32> to vector<8x32xf32>
    %31 = arith.addf %29, %30 : vector<8x32xf32>
    %cst_14 = arith.constant dense<0.000000e+00> : vector<8x32xf32>
    %32 = tpu.matmul %25, %31, %cst_14 {dimension_numbers = #tpu.dot_dimension_numbers<[1], [0], [0], [1], [0, 0, 1, 1], [], []>} : vector<8x8xf32>, vector<8x32xf32>, vector<8x32xf32> -> vector<8x32xf32>
    %33 = vector.extract_strided_slice %10 {offsets = [0, 16], sizes = [8, 16], strides = [1, 1]} : vector<16x96xf32> to vector<8x16xf32>
    %34 = vector.extract_strided_slice %10 {offsets = [0, 48], sizes = [8, 16], strides = [1, 1]} : vector<16x96xf32> to vector<8x16xf32>
    %cst_15 = arith.constant dense<0.000000e+00> : vector<8x8xf32>
    %35 = tpu.matmul %33, %34, %cst_15 {dimension_numbers = #tpu.dot_dimension_numbers<[1], [1], [0], [0], [0, 0, 1, 0], [], []>} : vector<8x16xf32>, vector<8x16xf32>, vector<8x8xf32> -> vector<8x8xf32>
    %36 = arith.addf %35, %21 : vector<8x8xf32>
    %37 = vector.extract_strided_slice %5 {offsets = [97, 0], sizes = [1, 32], strides = [1, 1]} : vector<104x32xf32> to vector<1x32xf32>
    %38 = vector.broadcast %17 : vector<8x1xf32> to vector<8x32xf32>
    %39 = vector.broadcast %37 : vector<1x32xf32> to vector<8x32xf32>
    %40 = arith.mulf %38, %39 : vector<8x32xf32>
    %41 = vector.extract_strided_slice %16 {offsets = [0, 0], sizes = [8, 32], strides = [1, 1]} : vector<16x32xf32> to vector<8x32xf32>
    %42 = arith.addf %40, %41 : vector<8x32xf32>
    %cst_16 = arith.constant dense<0.000000e+00> : vector<8x32xf32>
    %43 = tpu.matmul %36, %42, %cst_16 {dimension_numbers = #tpu.dot_dimension_numbers<[1], [0], [0], [1], [0, 0, 1, 1], [], []>} : vector<8x8xf32>, vector<8x32xf32>, vector<8x32xf32> -> vector<8x32xf32>
    %44 = arith.addf %32, %43 : vector<8x32xf32>
    %45 = vector.extract_strided_slice %1 {offsets = [8, 0], sizes = [8, 1], strides = [1, 1]} : vector<16x1xf32> to vector<8x1xf32>
    %46 = vector.extract_strided_slice %2 {offsets = [1, 0], sizes = [1, 8], strides = [1, 1]} : vector<2x8xf32> to vector<1x8xf32>
    %47 = vector.broadcast %45 : vector<8x1xf32> to vector<8x8xf32>
    %48 = vector.broadcast %46 : vector<1x8xf32> to vector<8x8xf32>
    %49 = arith.mulf %47, %48 : vector<8x8xf32>
    %50 = vector.extract_strided_slice %10 {offsets = [8, 0], sizes = [8, 16], strides = [1, 1]} : vector<16x96xf32> to vector<8x16xf32>
    %51 = vector.extract_strided_slice %10 {offsets = [8, 32], sizes = [8, 16], strides = [1, 1]} : vector<16x96xf32> to vector<8x16xf32>
    %cst_17 = arith.constant dense<0.000000e+00> : vector<8x8xf32>
    %52 = tpu.matmul %50, %51, %cst_17 {dimension_numbers = #tpu.dot_dimension_numbers<[1], [1], [0], [0], [0, 0, 1, 0], [], []>} : vector<8x16xf32>, vector<8x16xf32>, vector<8x8xf32> -> vector<8x8xf32>
    %53 = arith.addf %52, %49 : vector<8x8xf32>
    %54 = vector.extract_strided_slice %5 {offsets = [96, 0], sizes = [1, 32], strides = [1, 1]} : vector<104x32xf32> to vector<1x32xf32>
    %55 = vector.broadcast %45 : vector<8x1xf32> to vector<8x32xf32>
    %56 = vector.broadcast %54 : vector<1x32xf32> to vector<8x32xf32>
    %57 = arith.mulf %55, %56 : vector<8x32xf32>
    %58 = vector.extract_strided_slice %13 {offsets = [8, 0], sizes = [8, 32], strides = [1, 1]} : vector<16x32xf32> to vector<8x32xf32>
    %59 = arith.addf %57, %58 : vector<8x32xf32>
    %cst_18 = arith.constant dense<0.000000e+00> : vector<8x32xf32>
    %60 = tpu.matmul %53, %59, %cst_18 {dimension_numbers = #tpu.dot_dimension_numbers<[1], [0], [0], [1], [0, 0, 1, 1], [], []>} : vector<8x8xf32>, vector<8x32xf32>, vector<8x32xf32> -> vector<8x32xf32>
    %61 = vector.extract_strided_slice %10 {offsets = [8, 16], sizes = [8, 16], strides = [1, 1]} : vector<16x96xf32> to vector<8x16xf32>
    %62 = vector.extract_strided_slice %10 {offsets = [8, 48], sizes = [8, 16], strides = [1, 1]} : vector<16x96xf32> to vector<8x16xf32>
    %cst_19 = arith.constant dense<0.000000e+00> : vector<8x8xf32>
    %63 = tpu.matmul %61, %62, %cst_19 {dimension_numbers = #tpu.dot_dimension_numbers<[1], [1], [0], [0], [0, 0, 1, 0], [], []>} : vector<8x16xf32>, vector<8x16xf32>, vector<8x8xf32> -> vector<8x8xf32>
    %64 = arith.addf %63, %49 : vector<8x8xf32>
    %65 = vector.extract_strided_slice %5 {offsets = [97, 0], sizes = [1, 32], strides = [1, 1]} : vector<104x32xf32> to vector<1x32xf32>
    %66 = vector.broadcast %45 : vector<8x1xf32> to vector<8x32xf32>
    %67 = vector.broadcast %65 : vector<1x32xf32> to vector<8x32xf32>
    %68 = arith.mulf %66, %67 : vector<8x32xf32>
    %69 = vector.extract_strided_slice %16 {offsets = [8, 0], sizes = [8, 32], strides = [1, 1]} : vector<16x32xf32> to vector<8x32xf32>
    %70 = arith.addf %68, %69 : vector<8x32xf32>
    %cst_20 = arith.constant dense<0.000000e+00> : vector<8x32xf32>
    %71 = tpu.matmul %64, %70, %cst_20 {dimension_numbers = #tpu.dot_dimension_numbers<[1], [0], [0], [1], [0, 0, 1, 1], [], []>} : vector<8x8xf32>, vector<8x32xf32>, vector<8x32xf32> -> vector<8x32xf32>
    %72 = arith.addf %60, %71 : vector<8x32xf32>
    %73 = vector.extract_strided_slice %5 {offsets = [98, 0], sizes = [1, 32], strides = [1, 1]} : vector<104x32xf32> to vector<1x32xf32>
    %74 = tpu.concatenate %44, %72 in 0 : vector<8x32xf32>, vector<8x32xf32> -> vector<16x32xf32>
    %75 = vector.broadcast %73 : vector<1x32xf32> to vector<16x32xf32>
    %76 = arith.addf %74, %75 : vector<16x32xf32>
    %77 = vector.extract_strided_slice %5 {offsets = [99, 0], sizes = [1, 32], strides = [1, 1]} : vector<104x32xf32> to vector<1x32xf32>
    %78 = vector.extract_strided_slice %5 {offsets = [100, 0], sizes = [1, 32], strides = [1, 1]} : vector<104x32xf32> to vector<1x32xf32>
    %79 = arith.addf %0, %76 : vector<16x32xf32>
    %cst_21 = arith.constant dense<0.000000e+00> : vector<16xf32>
    %80 = vector.multi_reduction <add>, %79, %cst_21 [1] : vector<16x32xf32> to vector<16xf32>
    %81 = vector.shape_cast %80 : vector<16xf32> to vector<16x1xf32>
    %cst_22 = arith.constant 3.200000e+01 : f32
    %82 = vector.broadcast %cst_22 : f32 to vector<16x1xf32>
    %83 = arith.divf %81, %82 : vector<16x1xf32>
    %84 = vector.broadcast %83 : vector<16x1xf32> to vector<16x32xf32>
    %85 = arith.subf %79, %84 : vector<16x32xf32>
    %86 = arith.mulf %85, %85 : vector<16x32xf32>
    %cst_23 = arith.constant dense<0.000000e+00> : vector<16xf32>
    %87 = vector.multi_reduction <add>, %86, %cst_23 [1] : vector<16x32xf32> to vector<16xf32>
    %88 = vector.shape_cast %87 : vector<16xf32> to vector<16x1xf32>
    %cst_24 = arith.constant 3.200000e+01 : f32
    %89 = vector.broadcast %cst_24 : f32 to vector<16x1xf32>
    %90 = arith.divf %88, %89 : vector<16x1xf32>
    %91 = vector.broadcast %83 : vector<16x1xf32> to vector<16x32xf32>
    %92 = arith.subf %79, %91 : vector<16x32xf32>
    %cst_25 = arith.constant 9.99999974E-6 : f32
    %93 = vector.broadcast %cst_25 : f32 to vector<16x1xf32>
    %94 = arith.addf %90, %93 : vector<16x1xf32>
    %95 = math.rsqrt %94 : vector<16x1xf32>
    %96 = vector.broadcast %95 : vector<16x1xf32> to vector<16x32xf32>
    %97 = arith.mulf %92, %96 : vector<16x32xf32>
    %98 = vector.broadcast %77 : vector<1x32xf32> to vector<16x32xf32>
    %99 = arith.mulf %97, %98 : vector<16x32xf32>
    %100 = vector.broadcast %78 : vector<1x32xf32> to vector<16x32xf32>
    %101 = arith.addf %99, %100 : vector<16x32xf32>
    %102 = vector.extract_strided_slice %4 {offsets = [0, 0], sizes = [32, 64], strides = [1, 1]} : vector<33x64xf32> to vector<32x64xf32>
    %103 = vector.extract_strided_slice %4 {offsets = [32, 0], sizes = [1, 64], strides = [1, 1]} : vector<33x64xf32> to vector<1x64xf32>
    %104 = vector.extract_strided_slice %5 {offsets = [0, 0], sizes = [64, 32], strides = [1, 1]} : vector<104x32xf32> to vector<64x32xf32>
    %105 = vector.extract_strided_slice %5 {offsets = [101, 0], sizes = [1, 32], strides = [1, 1]} : vector<104x32xf32> to vector<1x32xf32>
    %cst_26 = arith.constant dense<0.000000e+00> : vector<16x64xf32>
    %106 = tpu.matmul %101, %102, %cst_26 {dimension_numbers = #tpu.dot_dimension_numbers<[1], [0], [0], [1], [0, 0, 1, 1], [], []>} : vector<16x32xf32>, vector<32x64xf32>, vector<16x64xf32> -> vector<16x64xf32>
    %107 = vector.broadcast %103 : vector<1x64xf32> to vector<16x64xf32>
    %108 = arith.addf %106, %107 : vector<16x64xf32>
    %cst_27 = arith.constant 0.000000e+00 : f32
    %109 = vector.broadcast %cst_27 : f32 to vector<16x64xf32>
    %110 = arith.maximumf %108, %109 : vector<16x64xf32>
    %cst_28 = arith.constant dense<0.000000e+00> : vector<16x32xf32>
    %111 = tpu.matmul %110, %104, %cst_28 {dimension_numbers = #tpu.dot_dimension_numbers<[1], [0], [0], [1], [0, 0, 1, 1], [], []>} : vector<16x64xf32>, vector<64x32xf32>, vector<16x32xf32> -> vector<16x32xf32>
    %112 = vector.broadcast %105 : vector<1x32xf32> to vector<16x32xf32>
    %113 = arith.addf %111, %112 : vector<16x32xf32>
    %114 = vector.extract_strided_slice %5 {offsets = [102, 0], sizes = [1, 32], strides = [1, 1]} : vector<104x32xf32> to vector<1x32xf32>
    %115 = vector.extract_strided_slice %5 {offsets = [103, 0], sizes = [1, 32], strides = [1, 1]} : vector<104x32xf32> to vector<1x32xf32>
    %116 = arith.addf %101, %113 : vector<16x32xf32>
    %cst_29 = arith.constant dense<0.000000e+00> : vector<16xf32>
    %117 = vector.multi_reduction <add>, %116, %cst_29 [1] : vector<16x32xf32> to vector<16xf32>
    %118 = vector.shape_cast %117 : vector<16xf32> to vector<16x1xf32>
    %cst_30 = arith.constant 3.200000e+01 : f32
    %119 = vector.broadcast %cst_30 : f32 to vector<16x1xf32>
    %120 = arith.divf %118, %119 : vector<16x1xf32>
    %121 = vector.broadcast %120 : vector<16x1xf32> to vector<16x32xf32>
    %122 = arith.subf %116, %121 : vector<16x32xf32>
    %123 = arith.mulf %122, %122 : vector<16x32xf32>
    %cst_31 = arith.constant dense<0.000000e+00> : vector<16xf32>
    %124 = vector.multi_reduction <add>, %123, %cst_31 [1] : vector<16x32xf32> to vector<16xf32>
    %125 = vector.shape_cast %124 : vector<16xf32> to vector<16x1xf32>
    %cst_32 = arith.constant 3.200000e+01 : f32
    %126 = vector.broadcast %cst_32 : f32 to vector<16x1xf32>
    %127 = arith.divf %125, %126 : vector<16x1xf32>
    %128 = vector.broadcast %120 : vector<16x1xf32> to vector<16x32xf32>
    %129 = arith.subf %116, %128 : vector<16x32xf32>
    %cst_33 = arith.constant 9.99999974E-6 : f32
    %130 = vector.broadcast %cst_33 : f32 to vector<16x1xf32>
    %131 = arith.addf %127, %130 : vector<16x1xf32>
    %132 = math.rsqrt %131 : vector<16x1xf32>
    %133 = vector.broadcast %132 : vector<16x1xf32> to vector<16x32xf32>
    %134 = arith.mulf %129, %133 : vector<16x32xf32>
    %135 = vector.broadcast %114 : vector<1x32xf32> to vector<16x32xf32>
    %136 = arith.mulf %134, %135 : vector<16x32xf32>
    %137 = vector.broadcast %115 : vector<1x32xf32> to vector<16x32xf32>
    %138 = arith.addf %136, %137 : vector<16x32xf32>
    %c0_34 = arith.constant 0 : index
    %c0_35 = arith.constant 0 : index
    %139 = vector.load %arg6[%c0_34, %c0_35] : memref<16x32xf32, #tpu.memory_space<vmem>>, vector<16x32xf32>
    tpu.vector_store %arg6[%c0_34, %c0_35], %138 {strides = array<i32>} : memref<16x32xf32, #tpu.memory_space<vmem>>, vector<16x32xf32>,
    return
  }
}

</mosaic_0001>

<llo_original>
// kernel: tpu_custom_call.1
$region0: #{tpu_custom_call.1}
  #allocation0 [shape = 'u32[]', space=smem, size = 0x4, offset = 0x4, fixed_abs, tag = 'smem constant byte address 0x4 - core index']
  #allocation1 [shape = 'u32[72,128]{1,0:T(1,128)}', space=vmem, size = 0x9000, scoped, tag = 'internal scratch']
  %s0 = inlined_call_operand.vmem [shape: f32[16,32], index: 0, kind: input, shape index: {}]
  %s1 = inlined_call_operand.vmem [shape: f32[16,1], index: 1, kind: input, shape index: {}]
  %s2 = inlined_call_operand.vmem [shape: f32[2,8], index: 2, kind: input, shape index: {}]
  %s3 = inlined_call_operand.vmem [shape: f32[33,96], index: 3, kind: input, shape index: {}]
  %s4 = inlined_call_operand.vmem [shape: f32[33,64], index: 4, kind: input, shape index: {}]
  %s5 = inlined_call_operand.vmem [shape: f32[104,32], index: 5, kind: input, shape index: {}]
  %s6 = inlined_call_operand.hbm [shape: f32[16,32], index: 6, kind: output, shape index: {}]
  %s7 = sld [smem:[#allocation0]]
  $region34: #{tpu_custom_call.1} parent=0
    _
  %s9 = ssub.s32 1, %s7
  %s10 = scalar_select 0, %s9, %s7
  $region1: #{tpu_custom_call.1} parent=0
    #allocation2 [shape = 'u8[8192]{0}', space=vmem, size = 0x2000, scoped, tag = 'output window, operand 0, single buffered']
    #allocation3 [shape = 's32[1]{0}', space=sflag, size = 0x4, scoped, tag = 'scoped memory for tpu_custom_call.1']
    %11 = vsyncpa [#allocation3], 0
    // Predicated region
    $region2: #{tpu_custom_call.1} parent=1 // pred_check
      _
    $region3: #{tpu_custom_call.1} parent=1 // pred_check_branch
      %13 = sbr.rel (0) target = $region5
    $region4: #{tpu_custom_call.1} parent=1 // pred_region
      _
    $region5: #{tpu_custom_call.1} parent=1 // pred_fallthru
      _
    // Predicated region
    $region6: #{tpu_custom_call.1} parent=1 // pred_check
      _
    $region7: #{tpu_custom_call.1} parent=1 // pred_check_branch
      %15 = sbr.rel (0) target = $region9
    $region8: #{tpu_custom_call.1} parent=1 // pred_region
      _
    $region9: #{tpu_custom_call.1} parent=1 // pred_fallthru
      _
    // Predicated region
    $region10: #{tpu_custom_call.1} parent=1 // pred_check
      _
    $region11: #{tpu_custom_call.1} parent=1 // pred_check_branch
      %17 = sbr.rel (0) target = $region13
    $region12: #{tpu_custom_call.1} parent=1 // pred_region
      _
    $region13: #{tpu_custom_call.1} parent=1 // pred_fallthru
      _
    // Predicated region
    $region14: #{tpu_custom_call.1} parent=1 // pred_check
      _
    $region15: #{tpu_custom_call.1} parent=1 // pred_check_branch
      %19 = sbr.rel (0) target = $region17
    $region16: #{tpu_custom_call.1} parent=1 // pred_region
      _
    $region17: #{tpu_custom_call.1} parent=1 // pred_fallthru
      _
    // Predicated region
    $region18: #{tpu_custom_call.1} parent=1 // pred_check
      _
    $region19: #{tpu_custom_call.1} parent=1 // pred_check_branch
      %21 = sbr.rel (0) target = $region21
    $region20: #{tpu_custom_call.1} parent=1 // pred_region
      _
    $region21: #{tpu_custom_call.1} parent=1 // pred_fallthru
      _
    // Predicated region
    $region22: #{tpu_custom_call.1} parent=1 // pred_check
      _
    $region23: #{tpu_custom_call.1} parent=1 // pred_check_branch
      %23 = sbr.rel (0) target = $region25
    $region24: #{tpu_custom_call.1} parent=1 // pred_region
      _
    $region25: #{tpu_custom_call.1} parent=1 // pred_fallthru
      _
    %v24 = vld [vmem:[%s0] sm:$0xff]
    %v25 = vld [vmem:[%s0 + $0x8] sm:$0xff]
    %v26 = vld [vmem:[%s1] sm:$0xff]
    %v27 = vld [vmem:[%s1 + $0x8] sm:$0xff]
    %v28 = vld [vmem:[%s2] sm:$0x3]
    %v29 = vld [vmem:[%s3] sm:$0xff]
    %v30 = vld [vmem:[%s3 + $0x8] sm:$0xff]
    %v31 = vld [vmem:[%s3 + $0x10] sm:$0xff]
    %v32 = vld [vmem:[%s3 + $0x18] sm:$0xff]
    %v33 = vld [vmem:[%s3 + $0x20] sm:$0x1]
    %v34 = vld [vmem:[%s4] sm:$0xff]
    %v35 = vld [vmem:[%s4 + $0x8] sm:$0xff]
    %v36 = vld [vmem:[%s4 + $0x10] sm:$0xff]
    %v37 = vld [vmem:[%s4 + $0x18] sm:$0xff]
    %v38 = vld [vmem:[%s4 + $0x20] sm:$0x1]
    %v39 = vld [vmem:[%s5] sm:$0xff]
    %v40 = vld [vmem:[%s5 + $0x8] sm:$0xff]
    %v41 = vld [vmem:[%s5 + $0x10] sm:$0xff]
    %v42 = vld [vmem:[%s5 + $0x18] sm:$0xff]
    %v43 = vld [vmem:[%s5 + $0x20] sm:$0xff]
    %v44 = vld [vmem:[%s5 + $0x28] sm:$0xff]
    %v45 = vld [vmem:[%s5 + $0x30] sm:$0xff]
    %v46 = vld [vmem:[%s5 + $0x38] sm:$0xff]
    %v47 = vld [vmem:[%s5 + $0x40] sm:$0xff]
    %v48 = vld [vmem:[%s5 + $0x48] sm:$0xff]
    %v49 = vld [vmem:[%s5 + $0x50] sm:$0xff]
    %v50 = vld [vmem:[%s5 + $0x58] sm:$0xff]
    %v51 = vld [vmem:[%s5 + $0x60] sm:$0xff]
    %v52 = vperm.slane %v33, 0
    %vm53 = vcmask 261120
    %v55 = vsel %vm53, %v24, 0
    %v58 = vsel %vm53, %v25, 0
    %60 = vmatpush.msra.mxu0 0.0
    %61 = vmatpush.msra.mxu0 0.0
    %62 = vmatpush.msra.mxu0 0.0
    %63 = vmatpush.msra.mxu0 0.0
    %64 = vmatpush.msra.mxu0 0.0
    %65 = vmatpush.msra.mxu0 0.0
    %66 = vmatpush.msra.mxu0 0.0
    %67 = vmatpush.msra.mxu0 0.0
    %68 = vmatpush.msra.mxu0 0.0
    %69 = vmatpush.msra.mxu0 0.0
    %70 = vmatpush.msra.mxu0 0.0
    %71 = vmatpush.msra.mxu0 0.0
    %72 = vmatpush.msra.mxu0 %v32
    %73 = vmatpush.msra.mxu0 %v31
    %74 = vmatpush.msra.mxu0 %v30
    %75 = vmatpush.msra.mxu0 %v29
    %76 = vmatmul.f32.gmra.mxu0 %v55
    %v77 = vpop.f32.mrf.mxu0
    %v78 = vadd.f32 %v52, %v77
    %79 = vmatmul.f32.gmra.mxu0 %v58
    %v80 = vpop.f32.mrf.mxu0
    %v81 = vadd.f32 %v52, %v80
    %82 = vdwg.mxu0
    %85 = vrot.lane.b32.xlu0 %v78, 64
    %v86 = vpop.permute.xlu0 %85
    %87 = vrot.lane.b32.xlu0 %v81, 64
    %v88 = vpop.permute.xlu0 %87
    %vm89 = vcmask 130048
    %v90 = vsel %vm89, %v86, 0
    %v92 = vsel %vm89, %v88, 0
    %94 = vmatpush.msra.mxu0 0.0
    %95 = vmatpush.msra.mxu0 0.0
    %96 = vmatpush.msra.mxu0 0.0
    %97 = vmatpush.msra.mxu0 0.0
    %98 = vmatpush.msra.mxu0 0.0
    %99 = vmatpush.msra.mxu0 0.0
    %100 = vmatpush.msra.mxu0 0.0
    %101 = vmatpush.msra.mxu0 0.0
    %102 = vmatpush.msra.mxu0 0.0
    %103 = vmatpush.msra.mxu0 0.0
    %104 = vmatpush.msra.mxu0 0.0
    %105 = vmatpush.msra.mxu0 0.0
    %106 = vmatpush.msra.mxu0 0.0
    %107 = vmatpush.msra.mxu0 0.0
    %108 = vmatpush.msra.mxu0 %v48
    %109 = vmatpush.msra.mxu0 %v47
    %110 = vmatmul.f32.gmra.mxu0 %v90
    %v111 = vpop.f32.mrf.mxu0
    %v112 = vadd.f32 0.0, %v111
    %113 = vmatmul.f32.gmra.mxu0 %v92
    %v114 = vpop.f32.mrf.mxu0
    %v115 = vadd.f32 0.0, %v114
    %116 = vdwg.mxu0
    %117 = vrot.lane.b32.xlu0 %v78, 48
    %v118 = vpop.permute.xlu0 %117
    %119 = vrot.lane.b32.xlu0 %v81, 48
    %v120 = vpop.permute.xlu0 %119
    %v121 = vsel %vm89, %v118, 0
    %v123 = vsel %vm89, %v120, 0
    %125 = vmatpush.msra.mxu0 0.0
    %126 = vmatpush.msra.mxu0 0.0
    %127 = vmatpush.msra.mxu0 0.0
    %128 = vmatpush.msra.mxu0 0.0
    %129 = vmatpush.msra.mxu0 0.0
    %130 = vmatpush.msra.mxu0 0.0
    %131 = vmatpush.msra.mxu0 0.0
    %132 = vmatpush.msra.mxu0 0.0
    %133 = vmatpush.msra.mxu0 0.0
    %134 = vmatpush.msra.mxu0 0.0
    %135 = vmatpush.msra.mxu0 0.0
    %136 = vmatpush.msra.mxu0 0.0
    %137 = vmatpush.msra.mxu0 0.0
    %138 = vmatpush.msra.mxu0 0.0
    %139 = vmatpush.msra.mxu0 %v50
    %140 = vmatpush.msra.mxu0 %v49
    %141 = vmatmul.f32.gmra.mxu0 %v121
    %v142 = vpop.f32.mrf.mxu0
    %v143 = vadd.f32 0.0, %v142
    %144 = vmatmul.f32.gmra.mxu0 %v123
    %v145 = vpop.f32.mrf.mxu0
    %v146 = vadd.f32 0.0, %v145
    %147 = vdwg.mxu0
    %149 = vset.pattern.permute.xlu0 0
    %150 = vperm.xlu0 %149, %v26
    %v151 = vpop.permute.xlu0 %150
    %v153 = vperm.slane %v28, 0
    %v154 = vmul.f32 %v151, %v153
    %155 = vrot.lane.b32.xlu0 %v78, 96
    %v156 = vpop.permute.xlu0 %155
    %v157 = vsel %vm89, %v78, 0
    %v159 = vsel %vm89, %v156, 0
    %161 = vmatpush.xpose.msra.mxu0 0.0
    %162 = vmatpush.xpose.msra.mxu0 0.0
    %163 = vmatpush.xpose.msra.mxu0 0.0
    %164 = vmatpush.xpose.msra.mxu0 0.0
    %165 = vmatpush.xpose.msra.mxu0 0.0
    %166 = vmatpush.xpose.msra.mxu0 0.0
    %167 = vmatpush.xpose.msra.mxu0 0.0
    %168 = vmatpush.xpose.msra.mxu0 0.0
    %169 = vmatpush.xpose.msra.mxu0 0.0
    %170 = vmatpush.xpose.msra.mxu0 0.0
    %171 = vmatpush.xpose.msra.mxu0 0.0
    %172 = vmatpush.xpose.msra.mxu0 0.0
    %173 = vmatpush.xpose.msra.mxu0 0.0
    %174 = vmatpush.xpose.msra.mxu0 0.0
    %175 = vmatpush.xpose.msra.mxu0 0.0
    %176 = vmatpush.xpose.msra.mxu0 %v159
    %177 = vmatmul.f32.gmra.mxu0 %v157
    %v178 = vpop.f32.mrf.mxu0
    %v179 = vadd.f32 %v154, %v178
    %180 = vdwg.mxu0
    %v181 = vperm.slane %v51, 0
    %v182 = vmul.f32 %v151, %v181
    %v183 = vadd.f32 %v182, %v112
    %184 = vrot.lane.b32.xlu0 %v78, 112
    %v185 = vpop.permute.xlu0 %184
    %186 = vrot.lane.b32.xlu0 %v78, 80
    %v187 = vpop.permute.xlu0 %186
    %v188 = vsel %vm89, %v185, 0
    %v190 = vsel %vm89, %v187, 0
    %192 = vmatpush.xpose.msra.mxu0 0.0
    %193 = vmatpush.xpose.msra.mxu0 0.0
    %194 = vmatpush.xpose.msra.mxu0 0.0
    %195 = vmatpush.xpose.msra.mxu0 0.0
    %196 = vmatpush.xpose.msra.mxu0 0.0
    %197 = vmatpush.xpose.msra.mxu0 0.0
    %198 = vmatpush.xpose.msra.mxu0 0.0
    %199 = vmatpush.xpose.msra.mxu0 0.0
    %200 = vmatpush.xpose.msra.mxu0 0.0
    %201 = vmatpush.xpose.msra.mxu0 0.0
    %202 = vmatpush.xpose.msra.mxu0 0.0
    %203 = vmatpush.xpose.msra.mxu0 0.0
    %204 = vmatpush.xpose.msra.mxu0 0.0
    %205 = vmatpush.xpose.msra.mxu0 0.0
    %206 = vmatpush.xpose.msra.mxu0 0.0
    %207 = vmatpush.xpose.msra.mxu0 %v190
    %208 = vmatmul.f32.gmra.mxu0 %v188
    %v209 = vpop.f32.mrf.mxu0
    %v210 = vadd.f32 %v154, %v209
    %211 = vdwg.mxu0
    %v212 = vperm.slane %v51, 1
    %v213 = vmul.f32 %v151, %v212
    %v214 = vadd.f32 %v213, %v143
    %vm215 = vcmask 64512
    %v217 = vsel %vm215, %v210, 0
    %219 = vmatpush.msra.mxu0 0.0
    %220 = vmatpush.msra.mxu0 0.0
    %221 = vmatpush.msra.mxu0 0.0
    %222 = vmatpush.msra.mxu0 0.0
    %223 = vmatpush.msra.mxu0 0.0
    %224 = vmatpush.msra.mxu0 0.0
    %225 = vmatpush.msra.mxu0 0.0
    %226 = vmatpush.msra.mxu0 0.0
    %227 = vmatpush.msra.mxu0 0.0
    %228 = vmatpush.msra.mxu0 0.0
    %229 = vmatpush.msra.mxu0 0.0
    %230 = vmatpush.msra.mxu0 0.0
    %231 = vmatpush.msra.mxu0 0.0
    %232 = vmatpush.msra.mxu0 0.0
    %233 = vmatpush.msra.mxu0 0.0
    %234 = vmatpush.msra.mxu0 %v214
    %235 = vmatmul.f32.gmra.mxu0 %v217
    %v236 = vpop.f32.mrf.mxu0
    %v237 = vadd.f32 0.0, %v236
    %238 = vdwg.mxu0
    %v240 = vsel %vm215, %v179, 0
    %242 = vmatpush.msra.mxu0 0.0
    %243 = vmatpush.msra.mxu0 0.0
    %244 = vmatpush.msra.mxu0 0.0
    %245 = vmatpush.msra.mxu0 0.0
    %246 = vmatpush.msra.mxu0 0.0
    %247 = vmatpush.msra.mxu0 0.0
    %248 = vmatpush.msra.mxu0 0.0
    %249 = vmatpush.msra.mxu0 0.0
    %250 = vmatpush.msra.mxu0 0.0
    %251 = vmatpush.msra.mxu0 0.0
    %252 = vmatpush.msra.mxu0 0.0
    %253 = vmatpush.msra.mxu0 0.0
    %254 = vmatpush.msra.mxu0 0.0
    %255 = vmatpush.msra.mxu0 0.0
    %256 = vmatpush.msra.mxu0 0.0
    %257 = vmatpush.msra.mxu0 %v183
    %258 = vmatmul.f32.gmra.mxu0 %v240
    %v259 = vpop.f32.mrf.mxu0
    %v260 = vadd.f32 %v237, %v259
    %261 = vdwg.mxu0
    %263 = vset.pattern.permute.xlu0 0
    %264 = vperm.xlu0 %263, %v27
    %v265 = vpop.permute.xlu0 %264
    %v267 = vperm.slane %v28, 1
    %v268 = vmul.f32 %v265, %v267
    %269 = vrot.lane.b32.xlu0 %v81, 96
    %v270 = vpop.permute.xlu0 %269
    %v271 = vsel %vm89, %v81, 0
    %v273 = vsel %vm89, %v270, 0
    %275 = vmatpush.xpose.msra.mxu0 0.0
    %276 = vmatpush.xpose.msra.mxu0 0.0
    %277 = vmatpush.xpose.msra.mxu0 0.0
    %278 = vmatpush.xpose.msra.mxu0 0.0
    %279 = vmatpush.xpose.msra.mxu0 0.0
    %280 = vmatpush.xpose.msra.mxu0 0.0
    %281 = vmatpush.xpose.msra.mxu0 0.0
    %282 = vmatpush.xpose.msra.mxu0 0.0
    %283 = vmatpush.xpose.msra.mxu0 0.0
    %284 = vmatpush.xpose.msra.mxu0 0.0
    %285 = vmatpush.xpose.msra.mxu0 0.0
    %286 = vmatpush.xpose.msra.mxu0 0.0
    %287 = vmatpush.xpose.msra.mxu0 0.0
    %288 = vmatpush.xpose.msra.mxu0 0.0
    %289 = vmatpush.xpose.msra.mxu0 0.0
    %290 = vmatpush.xpose.msra.mxu0 %v273
    %291 = vmatmul.f32.gmra.mxu0 %v271
    %v292 = vpop.f32.mrf.mxu0
    %v293 = vadd.f32 %v268, %v292
    %294 = vdwg.mxu0
    %v295 = vmul.f32 %v265, %v181
    %v296 = vadd.f32 %v295, %v115
    %297 = vrot.lane.b32.xlu0 %v81, 112
    %v298 = vpop.permute.xlu0 %297
    %299 = vrot.lane.b32.xlu0 %v81, 80
    %v300 = vpop.permute.xlu0 %299
    %v301 = vsel %vm89, %v298, 0
    %v303 = vsel %vm89, %v300, 0
    %305 = vmatpush.xpose.msra.mxu0 0.0
    %306 = vmatpush.xpose.msra.mxu0 0.0
    %307 = vmatpush.xpose.msra.mxu0 0.0
    %308 = vmatpush.xpose.msra.mxu0 0.0
    %309 = vmatpush.xpose.msra.mxu0 0.0
    %310 = vmatpush.xpose.msra.mxu0 0.0
    %311 = vmatpush.xpose.msra.mxu0 0.0
    %312 = vmatpush.xpose.msra.mxu0 0.0
    %313 = vmatpush.xpose.msra.mxu0 0.0
    %314 = vmatpush.xpose.msra.mxu0 0.0
    %315 = vmatpush.xpose.msra.mxu0 0.0
    %316 = vmatpush.xpose.msra.mxu0 0.0
    %317 = vmatpush.xpose.msra.mxu0 0.0
    %318 = vmatpush.xpose.msra.mxu0 0.0
    %319 = vmatpush.xpose.msra.mxu0 0.0
    %320 = vmatpush.xpose.msra.mxu0 %v303
    %321 = vmatmul.f32.gmra.mxu0 %v301
    %v322 = vpop.f32.mrf.mxu0
    %v323 = vadd.f32 %v268, %v322
    %324 = vdwg.mxu0
    %v325 = vmul.f32 %v265, %v212
    %v326 = vadd.f32 %v325, %v146
    %v328 = vsel %vm215, %v323, 0
    %330 = vmatpush.msra.mxu0 0.0
    %331 = vmatpush.msra.mxu0 0.0
    %332 = vmatpush.msra.mxu0 0.0
    %333 = vmatpush.msra.mxu0 0.0
    %334 = vmatpush.msra.mxu0 0.0
    %335 = vmatpush.msra.mxu0 0.0
    %336 = vmatpush.msra.mxu0 0.0
    %337 = vmatpush.msra.mxu0 0.0
    %338 = vmatpush.msra.mxu0 0.0
    %339 = vmatpush.msra.mxu0 0.0
    %340 = vmatpush.msra.mxu0 0.0
    %341 = vmatpush.msra.mxu0 0.0
    %342 = vmatpush.msra.mxu0 0.0
    %343 = vmatpush.msra.mxu0 0.0
    %344 = vmatpush.msra.mxu0 0.0
    %345 = vmatpush.msra.mxu0 %v326
    %346 = vmatmul.f32.gmra.mxu0 %v328
    %v347 = vpop.f32.mrf.mxu0
    %v348 = vadd.f32 0.0, %v347
    %349 = vdwg.mxu0
    %v351 = vsel %vm215, %v293, 0
    %353 = vmatpush.msra.mxu0 0.0
    %354 = vmatpush.msra.mxu0 0.0
    %355 = vmatpush.msra.mxu0 0.0
    %356 = vmatpush.msra.mxu0 0.0
    %357 = vmatpush.msra.mxu0 0.0
    %358 = vmatpush.msra.mxu0 0.0
    %359 = vmatpush.msra.mxu0 0.0
    %360 = vmatpush.msra.mxu0 0.0
    %361 = vmatpush.msra.mxu0 0.0
    %362 = vmatpush.msra.mxu0 0.0
    %363 = vmatpush.msra.mxu0 0.0
    %364 = vmatpush.msra.mxu0 0.0
    %365 = vmatpush.msra.mxu0 0.0
    %366 = vmatpush.msra.mxu0 0.0
    %367 = vmatpush.msra.mxu0 0.0
    %368 = vmatpush.msra.mxu0 %v296
    %369 = vmatmul.f32.gmra.mxu0 %v351
    %v370 = vpop.f32.mrf.mxu0
    %v371 = vadd.f32 %v348, %v370
    %372 = vdwg.mxu0
    %v373 = vperm.slane %v51, 2
    %v374 = vadd.f32 %v260, %v373
    %v375 = vadd.f32 %v371, %v373
    %v376 = vadd.f32 %v24, %v374
    %v377 = vadd.f32 %v25, %v375
    %v378 = vsel %vm53, %v376, 0.0
    %379 = vadd.xlane.f32.xlu0 %v378
    %v380 = vpop.xlane.xlu0 %379
    %v381 = vsel %vm53, %v377, 0.0
    %382 = vadd.xlane.f32.xlu0 %v381
    %v383 = vpop.xlane.xlu0 %382
    %v384 = vrcp.pop 32.0
    %v385 = vmul.f32 32.0, %v384
    %v386 = vsub.f32 1.0, %v385
    %v387 = vmul.f32 %v384, %v386
    %v388 = vadd.f32 %v384, %v387
    %vm389 = vweird.f32 %v384
    %v390 = vsel %vm389, %v384, %v388
    %v391 = vmul.f32 %v380, %v390
    %v392 = vmul.f32 %v383, %v390
    %v393 = vsub.f32 %v376, %v391
    %v394 = vsub.f32 %v377, %v392
    %v395 = vmul.f32 %v393, %v393
    %v396 = vmul.f32 %v394, %v394
    %v397 = vsel %vm53, %v395, 0.0
    %398 = vadd.xlane.f32.xlu0 %v397
    %v399 = vpop.xlane.xlu0 %398
    %v400 = vsel %vm53, %v396, 0.0
    %401 = vadd.xlane.f32.xlu0 %v400
    %v402 = vpop.xlane.xlu0 %401
    %v403 = vmul.f32 %v399, %v390
    %v404 = vmul.f32 %v402, %v390
    %v405 = vadd.f32 %v403, 1e-05
    %v406 = vadd.f32 %v404, 1e-05
    %v407 = vrsqrt.pop %v405
    %v408 = vmul.f32 %v407, %v405
    %v409 = vmul.f32 %v408, %v407
    %v410 = vmul.f32 0.5, %v409
    %v411 = vsub.f32 1.5, %v410
    %v412 = vmul.f32 %v407, %v411
    %vm413 = vweird.f32 %v405
    %vm414 = vweird.f32 %v407
    %vm415 = vmor %vm413, %vm414
    %v416 = vsel %vm415, %v407, %v412
    %v417 = vrsqrt.pop %v406
    %v418 = vmul.f32 %v417, %v406
    %v419 = vmul.f32 %v418, %v417
    %v420 = vmul.f32 0.5, %v419
    %v421 = vsub.f32 1.5, %v420
    %v422 = vmul.f32 %v417, %v421
    %vm423 = vweird.f32 %v406
    %vm424 = vweird.f32 %v417
    %vm425 = vmor %vm423, %vm424
    %v426 = vsel %vm425, %v417, %v422
    %v427 = vmul.f32 %v393, %v416
    %v428 = vmul.f32 %v394, %v426
    %v429 = vperm.slane %v51, 3
    %v430 = vmul.f32 %v427, %v429
    %v431 = vmul.f32 %v428, %v429
    %v432 = vperm.slane %v51, 4
    %v433 = vadd.f32 %v430, %v432
    %v434 = vadd.f32 %v431, %v432
    %v435 = vperm.slane %v38, 0
    %v437 = vsel %vm53, %v433, 0
    %v440 = vsel %vm53, %v434, 0
    %442 = vmatpush.msra.mxu0 0.0
    %443 = vmatpush.msra.mxu0 0.0
    %444 = vmatpush.msra.mxu0 0.0
    %445 = vmatpush.msra.mxu0 0.0
    %446 = vmatpush.msra.mxu0 0.0
    %447 = vmatpush.msra.mxu0 0.0
    %448 = vmatpush.msra.mxu0 0.0
    %449 = vmatpush.msra.mxu0 0.0
    %450 = vmatpush.msra.mxu0 0.0
    %451 = vmatpush.msra.mxu0 0.0
    %452 = vmatpush.msra.mxu0 0.0
    %453 = vmatpush.msra.mxu0 0.0
    %454 = vmatpush.msra.mxu0 %v37
    %455 = vmatpush.msra.mxu0 %v36
    %456 = vmatpush.msra.mxu0 %v35
    %457 = vmatpush.msra.mxu0 %v34
    %458 = vmatmul.f32.gmra.mxu0 %v437
    %v459 = vpop.f32.mrf.mxu0
    %v460 = vadd.f32 %v435, %v459
    %461 = vmatmul.f32.gmra.mxu0 %v440
    %v462 = vpop.f32.mrf.mxu0
    %v463 = vadd.f32 %v435, %v462
    %464 = vdwg.mxu0
    %v465 = vmax.f32 %v460, 0.0
    %v466 = vmax.f32 %v463, 0.0
    %v467 = vperm.slane %v51, 5
    %vm468 = vcmask 523264
    %v470 = vsel %vm468, %v465, 0
    %v473 = vsel %vm468, %v466, 0
    %475 = vmatpush.msra.mxu0 0.0
    %476 = vmatpush.msra.mxu0 0.0
    %477 = vmatpush.msra.mxu0 0.0
    %478 = vmatpush.msra.mxu0 0.0
    %479 = vmatpush.msra.mxu0 0.0
    %480 = vmatpush.msra.mxu0 0.0
    %481 = vmatpush.msra.mxu0 0.0
    %482 = vmatpush.msra.mxu0 0.0
    %483 = vmatpush.msra.mxu0 %v46
    %484 = vmatpush.msra.mxu0 %v45
    %485 = vmatpush.msra.mxu0 %v44
    %486 = vmatpush.msra.mxu0 %v43
    %487 = vmatpush.msra.mxu0 %v42
    %488 = vmatpush.msra.mxu0 %v41
    %489 = vmatpush.msra.mxu0 %v40
    %490 = vmatpush.msra.mxu0 %v39
    %491 = vmatmul.f32.gmra.mxu0 %v470
    %v492 = vpop.f32.mrf.mxu0
    %v493 = vadd.f32 %v467, %v492
    %494 = vmatmul.f32.gmra.mxu0 %v473
    %v495 = vpop.f32.mrf.mxu0
    %v496 = vadd.f32 %v467, %v495
    %497 = vdwg.mxu0
    %v498 = vadd.f32 %v433, %v493
    %v499 = vadd.f32 %v434, %v496
    %v500 = vsel %vm53, %v498, 0.0
    %501 = vadd.xlane.f32.xlu0 %v500
    %v502 = vpop.xlane.xlu0 %501
    %v503 = vsel %vm53, %v499, 0.0
    %504 = vadd.xlane.f32.xlu0 %v503
    %v505 = vpop.xlane.xlu0 %504
    %v506 = vmul.f32 %v502, %v390
    %v507 = vmul.f32 %v505, %v390
    %v508 = vsub.f32 %v498, %v506
    %v509 = vsub.f32 %v499, %v507
    %v510 = vmul.f32 %v508, %v508
    %v511 = vmul.f32 %v509, %v509
    %v512 = vsel %vm53, %v510, 0.0
    %513 = vadd.xlane.f32.xlu0 %v512
    %v514 = vpop.xlane.xlu0 %513
    %v515 = vsel %vm53, %v511, 0.0
    %516 = vadd.xlane.f32.xlu0 %v515
    %v517 = vpop.xlane.xlu0 %516
    %v518 = vmul.f32 %v514, %v390
    %v519 = vmul.f32 %v517, %v390
    %v520 = vadd.f32 %v518, 1e-05
    %v521 = vadd.f32 %v519, 1e-05
    %v522 = vrsqrt.pop %v520
    %v523 = vmul.f32 %v522, %v520
    %v524 = vmul.f32 %v523, %v522
    %v525 = vmul.f32 0.5, %v524
    %v526 = vsub.f32 1.5, %v525
    %v527 = vmul.f32 %v522, %v526
    %vm528 = vweird.f32 %v520
    %vm529 = vweird.f32 %v522
    %vm530 = vmor %vm528, %vm529
    %v531 = vsel %vm530, %v522, %v527
    %v532 = vrsqrt.pop %v521
    %v533 = vmul.f32 %v532, %v521
    %v534 = vmul.f32 %v533, %v532
    %v535 = vmul.f32 0.5, %v534
    %v536 = vsub.f32 1.5, %v535
    %v537 = vmul.f32 %v532, %v536
    %vm538 = vweird.f32 %v521
    %vm539 = vweird.f32 %v532
    %vm540 = vmor %vm538, %vm539
    %v541 = vsel %vm540, %v532, %v537
    %v542 = vmul.f32 %v508, %v531
    %v543 = vmul.f32 %v509, %v541
    %v544 = vperm.slane %v51, 6
    %v545 = vmul.f32 %v542, %v544
    %v546 = vmul.f32 %v543, %v544
    %v547 = vperm.slane %v51, 7
    %v548 = vadd.f32 %v545, %v547
    %v549 = vadd.f32 %v546, %v547
    %550 = vst.msk [vmem:[#allocation2] sm:$0xff] %vm53, %v548
    %551 = vst.msk [vmem:[#allocation2 + $0x8] sm:$0xff] %vm53, %v549
    // Predicated region
    $region26: #{tpu_custom_call.1} parent=1 // pred_check
      _
    $region27: #{tpu_custom_call.1} parent=1 // pred_check_branch
      %553 = sbr.rel (0) target = $region29
    $region28: #{tpu_custom_call.1} parent=1 // pred_region
      %555 = vsyncadd [#allocation3], 0
      %s556 = sshll.u32 [#allocation2], 4
      %s557 = int_to_ptr.vmem [resolvable:$true] %s556
      %s558 = sshll.u32 %s6, 4
      %s559 = int_to_ptr.hbm [resolvable:$true] %s558
      %564 = dma.vmem_to_hbm [thread:$0]  %s557, 256, %s559, [#allocation3], 128, 128, 8
    $region29: #{tpu_custom_call.1} parent=1 // pred_fallthru
      _
    // Predicated region
    $region30: #{tpu_custom_call.1} parent=1 // pred_check
      _
    $region31: #{tpu_custom_call.1} parent=1 // pred_check_branch
      %566 = sbr.rel (0) target = $region33
    $region32: #{tpu_custom_call.1} parent=1 // pred_region
      %568 = dma.done [#allocation3], 256
    $region33: #{tpu_custom_call.1} parent=1 // pred_fallthru
      _
    %569 = vsyncpa [#allocation3], 1

</llo_original>
